<compile_context>
chip_gen: v6e
topology: v6e:2x2x1
jax: 0.10.0
libtpu: 0.0.40
codegen_flags: <defaults>
</compile_context>

<pallas_src>
import functools

import jax
import jax.numpy as jnp
from jax.experimental import pallas as pl
from jax.experimental.pallas import tpu as pltpu


def _rmsnorm_kernel(x_ref, w_ref, o_ref, *, eps):
    x = x_ref[...]                                   # (tm, C), native dtype
    xf = x.astype(jnp.float32)
    var = jnp.mean(xf * xf, axis=-1, keepdims=True)  # (tm, 1) f32 reduction
    inv_rms = jax.lax.rsqrt(var + eps)               # (tm, 1), exact rsqrt
    w = w_ref[...].astype(jnp.float32)               # (1, C)
    y = xf * (inv_rms * w)
    o_ref[...] = y.astype(o_ref.dtype)


def _round_up(x, m):
    return ((x + m - 1) // m) * m


def _tpu_generation_info():
    """Best-effort (vmem_capacity_bytes, num_tensorcores_per_chip)."""
    vmem_cap = 64 * 1024 * 1024   # conservative default (v7x per-TC VMEM)
    n_tc = 1
    try:
        vmem_cap = int(pltpu.get_tpu_info().vmem_capacity_bytes)
    except Exception:
        pass
    try:
        kind = str(jax.devices()[0].device_kind).lower()
        # v7x is the only generation with 2 TensorCores sharing the grid.
        if "7" in kind:
            n_tc = 2
    except Exception:
        pass
    return vmem_cap, n_tc


def rmsnorm(x, weight, eps=1e-5):
    """x: (..., C) float array, weight: (C,). Returns same shape/dtype as x."""
    orig_shape = x.shape
    C = orig_shape[-1]
    M = 1
    for d in orig_shape[:-1]:
        M *= d
    x2d = x.reshape(M, C)
    w2d = weight.reshape(1, C)

    itemsize = jnp.dtype(x.dtype).itemsize
    # Sublane packing multiple: 8 rows for f32, 16 for bf16, 32 for 8-bit.
    sublane = 8 * max(1, 4 // itemsize)

    vmem_cap, n_tc = _tpu_generation_info()

    # --- Row tile: cap the input block at ~4 MiB and <= 2048 rows. ---------
    target_block_bytes = 4 * 1024 * 1024
    tm = (target_block_bytes // max(1, C * itemsize)) // sublane * sublane
    tm = max(sublane, min(tm, 2048))
    # Never exceed the (sublane-rounded) row count.
    tm = min(tm, _round_up(M, sublane))

    # --- Megacore (2-TC chips only): keep an even number of >= 2 steps. ----
    if n_tc >= 2:
        steps = pl.cdiv(M, tm)
        if steps < 2:
            tm = max(sublane, _round_up(pl.cdiv(M, 2), sublane))
        elif steps % 2 == 1:
            # Best effort: shrink tm so the step count becomes even — avoids a
            # ~1.5x imbalance (one TC gets the extra block).
            tm = max(sublane, _round_up(pl.cdiv(M, steps + 1), sublane))

    grid = (pl.cdiv(M, tm),)

    # --- VMEM limit from actual block footprint (not whole-VMEM budget). ---
    blk_bytes = tm * C * itemsize
    f32_temps = 4 * tm * C * 4           # ~4 f32 (tm, C) intermediates in body
    need = 2 * blk_bytes + 2 * blk_bytes + f32_temps + (2 << 20)
    vmem_limit = int(min(max(need, 16 << 20), 48 << 20, (vmem_cap * 3) // 4))

    # Advisory only: square+reduce+2 muls ~ 4*M*C flops; weight counted once.
    cost = pl.CostEstimate(
        flops=4 * M * C,
        transcendentals=M,
        bytes_accessed=2 * M * C * itemsize + C * jnp.dtype(weight.dtype).itemsize,
    )

    kernel = functools.partial(_rmsnorm_kernel, eps=eps)

    out = pl.pallas_call(
        kernel,
        out_shape=jax.ShapeDtypeStruct((M, C), x.dtype),
        grid_spec=pltpu.PrefetchScalarGridSpec(
            num_scalar_prefetch=0,
            grid=grid,
            in_specs=[
                pl.BlockSpec((tm, C), lambda i: (i, 0)),
                pl.BlockSpec((1, C), lambda i: (0, 0)),
            ],
            out_specs=pl.BlockSpec((tm, C), lambda i: (i, 0)),
        ),
        compiler_params=pltpu.CompilerParams(
            dimension_semantics=("parallel",),
            vmem_limit_bytes=vmem_limit,
        ),
        cost_estimate=cost,
    )(x2d, w2d)

    return out.reshape(orig_shape)


def rmsnorm_ref(x, weight, eps=1e-5):
    xf = x.astype(jnp.float32)
    var = jnp.mean(jnp.square(xf), axis=-1, keepdims=True)
    rms = jnp.sqrt(var + eps)
    return ((xf / rms) * weight.astype(jnp.float32)).astype(x.dtype)


if __name__ == "__main__":
    key = jax.random.PRNGKey(0)

    # (B, N, C) sequence data; C=128 keeps output stores lane-dense.
    B, N, C = 2, 8, 128
    x = jax.random.normal(key, (B, N, C), dtype=jnp.float32)
    # nn.Parameter(torch.ones(dim)) -> deterministic ones init
    weight = jnp.ones((C,), dtype=jnp.float32)

    y = rmsnorm(x, weight, eps=1e-5)
    y = jax.block_until_ready(y)
    y_ref = rmsnorm_ref(x, weight, eps=1e-5)
    assert y.shape == (B, N, C)
    assert jnp.allclose(y, y_ref, atol=1e-5, rtol=1e-5), "mismatch vs reference"

    # Also exercise the partial-last-block path and the (correct but slow,
    # masked-store) non-multiple-of-128 lane path: M = 3*5 = 15 rows, C = 32.
    B2, N2, C2 = 3, 5, 32
    x2 = jax.random.normal(jax.random.PRNGKey(1), (B2, N2, C2), dtype=jnp.float32)
    w2 = jnp.ones((C2,), dtype=jnp.float32)
    y2 = jax.block_until_ready(rmsnorm(x2, w2, eps=1e-5))
    y2_ref = rmsnorm_ref(x2, w2, eps=1e-5)
    assert y2.shape == (B2, N2, C2)
    assert jnp.allclose(y2, y2_ref, atol=1e-5, rtol=1e-5), "mismatch (partial block)"

    print("KERNEL_OK")
</pallas_src>

<mosaic_0001>
module attributes {stable_mosaic.version = 11 : i64} {
  func.func @_rmsnorm_kernel(%arg0: i32, %arg1: memref<16x128xf32, #tpu.memory_space<vmem>>, %arg2: memref<1x128xf32, #tpu.memory_space<vmem>>, %arg3: memref<16x128xf32, #tpu.memory_space<vmem>>) attributes {dimension_semantics = [#tpu.dimension_semantics<parallel>], iteration_bounds = array<i64: 1>, scalar_prefetch = 0 : i64, scratch_operands = 0 : i64, tpu.core_type = #tpu.core_type<tc>, window_params = [{transform_indices = @transform_0, window_bounds = array<i64: 16, 128>}, {pipeline_mode = #tpu.pipeline_mode<synchronous>, transform_indices = @transform_1, window_bounds = array<i64: 1, 128>}, {transform_indices = @transform_2, window_bounds = array<i64: 16, 128>}]} {
    %c0 = arith.constant 0 : index
    %c0_0 = arith.constant 0 : index
    %0 = vector.load %arg1[%c0, %c0_0] : memref<16x128xf32, #tpu.memory_space<vmem>>, vector<16x128xf32>
    %1 = arith.mulf %0, %0 : vector<16x128xf32>
    %cst = arith.constant dense<0.000000e+00> : vector<16xf32>
    %2 = vector.multi_reduction <add>, %1, %cst [1] : vector<16x128xf32> to vector<16xf32>
    %3 = vector.shape_cast %2 : vector<16xf32> to vector<16x1xf32>
    %cst_1 = arith.constant 1.280000e+02 : f32
    %4 = vector.broadcast %cst_1 : f32 to vector<16x1xf32>
    %5 = arith.divf %3, %4 : vector<16x1xf32>
    %cst_2 = arith.constant 9.99999974E-6 : f32
    %6 = vector.broadcast %cst_2 : f32 to vector<16x1xf32>
    %7 = arith.addf %5, %6 : vector<16x1xf32>
    %8 = math.rsqrt %7 : vector<16x1xf32>
    %c0_3 = arith.constant 0 : index
    %c0_4 = arith.constant 0 : index
    %9 = vector.load %arg2[%c0_3, %c0_4] : memref<1x128xf32, #tpu.memory_space<vmem>>, vector<1x128xf32>
    %10 = vector.broadcast %8 : vector<16x1xf32> to vector<16x128xf32>
    %11 = vector.broadcast %9 : vector<1x128xf32> to vector<16x128xf32>
    %12 = arith.mulf %10, %11 : vector<16x128xf32>
    %13 = arith.mulf %0, %12 : vector<16x128xf32>
    %c0_5 = arith.constant 0 : index
    %c0_6 = arith.constant 0 : index
    %14 = vector.load %arg3[%c0_5, %c0_6] : memref<16x128xf32, #tpu.memory_space<vmem>>, vector<16x128xf32>
    tpu.vector_store %arg3[%c0_5, %c0_6], %13 {strides = array<i32>} : memref<16x128xf32, #tpu.memory_space<vmem>>, vector<16x128xf32>,
    return
  }
  func.func @transform_0(%arg0: i32) -> (i32, i32) {
    %c0_i32 = arith.constant 0 : i32
    %c0_i32_0 = arith.constant 0 : i32
    return %arg0, %c0_i32 : i32, i32
  }
  func.func @transform_1(%arg0: i32) -> (i32, i32) {
    %c0_i32 = arith.constant 0 : i32
    %c0_i32_0 = arith.constant 0 : i32
    %c0_i32_1 = arith.constant 0 : i32
    return %c0_i32, %c0_i32_0 : i32, i32
  }
  func.func @transform_2(%arg0: i32) -> (i32, i32) {
    %c0_i32 = arith.constant 0 : i32
    %c0_i32_0 = arith.constant 0 : i32
    return %arg0, %c0_i32 : i32, i32
  }
}

</mosaic_0001>

<llo_original>
// kernel: tpu_custom_call.1
$region0: #{tpu_custom_call.1}
  #allocation0 [shape = 'u32[]', space=smem, size = 0x4, offset = 0x4, fixed_abs, tag = 'smem constant byte address 0x4 - core index']
  #allocation1 [shape = 'u32[144,128]{1,0:T(1,128)}', space=vmem, size = 0x12000, scoped, tag = 'internal scratch']
  %s0 = inlined_call_operand.hbm [shape: f32[16,128], index: 0, kind: input, shape index: {}]
  %s1 = inlined_call_operand.vmem [shape: f32[1,128], index: 1, kind: input, shape index: {}]
  %s2 = inlined_call_operand.hbm [shape: f32[16,128], index: 2, kind: output, shape index: {}]
  %s3 = sld [smem:[#allocation0]]
  $region22: #{tpu_custom_call.1} parent=0
    _
  %s5 = ssub.s32 1, %s3
  %s6 = scalar_select 0, %s5, %s3
  $region1: #{tpu_custom_call.1} parent=0
    #allocation2 [shape = 'u8[8192]{0}', space=vmem, size = 0x2000, scoped, tag = 'input window, operand 0, single buffered']
    #allocation3 [shape = 's32[1]{0}', space=sflag, size = 0x4, scoped, tag = 'scoped memory for tpu_custom_call.1']
    #allocation4 [shape = 's32[1]{0}', space=sflag, size = 0x4, scoped, tag = 'scoped memory for tpu_custom_call.1']
    #allocation5 [shape = 'u8[8192]{0}', space=vmem, size = 0x2000, scoped, tag = 'output window, operand 0, single buffered']
    %7 = vsyncpa [#allocation3], 0
    %8 = vsyncpa [#allocation4], 0
    // Predicated region
    $region2: #{tpu_custom_call.1} parent=1 // pred_check
      _
    $region3: #{tpu_custom_call.1} parent=1 // pred_check_branch
      %10 = sbr.rel (0) target = $region5
    $region4: #{tpu_custom_call.1} parent=1 // pred_region
      %s12 = ssub.s32 256, 256
      %13 = vsyncadd [#allocation3], %s12
      %s14 = sshll.u32 [#allocation2], 4
      %s15 = int_to_ptr.vmem [resolvable:$true] %s14
      %20 = dma.hbm_to_vmem [thread:$0]  %s0, 256, %s15, [#allocation3], 128, 128, 8
    $region5: #{tpu_custom_call.1} parent=1 // pred_fallthru
      _
    // Predicated region
    $region6: #{tpu_custom_call.1} parent=1 // pred_check
      _
    $region7: #{tpu_custom_call.1} parent=1 // pred_check_branch
      %22 = sbr.rel (0) target = $region9
    $region8: #{tpu_custom_call.1} parent=1 // pred_region
      _
    $region9: #{tpu_custom_call.1} parent=1 // pred_fallthru
      _
    // Predicated region
    $region10: #{tpu_custom_call.1} parent=1 // pred_check
      _
    $region11: #{tpu_custom_call.1} parent=1 // pred_check_branch
      %24 = sbr.rel (0) target = $region13
    $region12: #{tpu_custom_call.1} parent=1 // pred_region
      %25 = dma.done [#allocation3], 256
    $region13: #{tpu_custom_call.1} parent=1 // pred_fallthru
      _
    %v26 = vld [vmem:[#allocation2] sm:$0xff]
    %v27 = vld [vmem:[#allocation2 + $0x8] sm:$0xff]
    %v28 = vmul.f32 %v26, %v26
    %v29 = vmul.f32 %v27, %v27
    %30 = vadd.xlane.f32.xlu0 %v28
    %v31 = vpop.xlane.xlu0 %30
    %32 = vadd.xlane.f32.xlu0 %v29
    %v33 = vpop.xlane.xlu0 %32
    %v34 = vrcp.pop 128.0
    %v35 = vmul.f32 %v31, %v34
    %v36 = vmul.f32 %v33, %v34
    %v37 = vadd.f32 %v35, 1e-05
    %v38 = vadd.f32 %v36, 1e-05
    %v39 = vrsqrt.pop %v37
    %v40 = vrsqrt.pop %v38
    %v41 = vld [vmem:[%s1] sm:$0x1]
    %v43 = vlaneseq
    %v44 = vshrl.u32 %v43, 7
    %v45 = vsub.s32 0, %v44
    %v46 = vrot.slane %v41, %v45
    %v48 = vmul.f32 %v39, %v46
    %v49 = vmul.f32 %v40, %v46
    %v50 = vmul.f32 %v26, %v48
    %v51 = vmul.f32 %v27, %v49
    %52 = vst [vmem:[#allocation5] sm:$0xff] %v50
    %53 = vst [vmem:[#allocation5 + $0x8] sm:$0xff] %v51
    // Predicated region
    $region14: #{tpu_custom_call.1} parent=1 // pred_check
      _
    $region15: #{tpu_custom_call.1} parent=1 // pred_check_branch
      %55 = sbr.rel (0) target = $region17
    $region16: #{tpu_custom_call.1} parent=1 // pred_region
      %s57 = ssub.s32 256, 256
      %58 = vsyncadd [#allocation4], %s57
      %s59 = sshll.u32 [#allocation5], 4
      %s60 = int_to_ptr.vmem [resolvable:$true] %s59
      %65 = dma.vmem_to_hbm [thread:$0]  %s60, 256, %s2, [#allocation4], 128, 128, 8
    $region17: #{tpu_custom_call.1} parent=1 // pred_fallthru
      _
    // Predicated region
    $region18: #{tpu_custom_call.1} parent=1 // pred_check
      _
    $region19: #{tpu_custom_call.1} parent=1 // pred_check_branch
      %67 = sbr.rel (0) target = $region21
    $region20: #{tpu_custom_call.1} parent=1 // pred_region
      %68 = dma.done [#allocation4], 256
    $region21: #{tpu_custom_call.1} parent=1 // pred_fallthru
      _
    %69 = vsyncpa [#allocation3], 1
    %70 = vsyncpa [#allocation4], 1

</llo_original>
